<compile_context>
chip_gen: v6e
topology: v6e:2x2x1
jax: 0.10.0
libtpu: 0.0.40
codegen_flags: <defaults>
</compile_context>

<pallas_src>
import functools

import jax
import jax.numpy as jnp
from jax.experimental import pallas as pl
from jax.experimental.pallas import tpu as pltpu


def _round_up(a, m):
    return ((a + m - 1) // m) * m


def _reference_forward(x, y, t, params, *, x_deg, y_deg):
    """Pure-JAX forward mirroring the PyTorch module (also the tiny-batch fast path)."""
    k = t[0, 0]
    xp = (x - params["x_means"][k]) / params["x_stds"][k]
    yp = (y - params["y_means"][k]) / params["y_stds"][k]
    feats = [xp ** d for d in range(1, x_deg + 1)] + [yp ** d for d in range(1, y_deg + 1)]
    X = jnp.concatenate(feats, axis=-1)
    return (X @ jnp.transpose(params["coef"][k]) + params["intercept"][k]).astype(jnp.float32)


def _poly_kernel(k_ref, x_ref, y_ref, xstat_ref, ystat_ref, w_ref, o_ref,
                 *, x_deg, y_deg, f, f_pad, out_dim):
    # k_ref (SMEM) is consumed by the index_maps for per-step parameter selection; the
    # body itself does not need it.
    del k_ref

    # Standardize.  Stats blocks are (1, 2, dim): row 0 = means, row 1 = 1/std
    # (precomputed in the wrapper -> broadcast multiply on the VPU, no divides).
    xst = xstat_ref[...]                                    # (1, 2, x_dim)
    yst = ystat_ref[...]                                    # (1, 2, y_dim)
    xp = (x_ref[...] - xst[0, 0:1, :]) * xst[0, 1:2, :]     # (TILE_B, x_dim)
    yp = (y_ref[...] - yst[0, 0:1, :]) * yst[0, 1:2, :]     # (TILE_B, y_dim)

    # Build the polynomial basis X = [xp, xp^2, ..., yp, ..., yp^y_deg, 1, 0-pad] as one
    # value of width f_pad.  The constant-1 column carries the intercept through the
    # matmul (bias folded into the weights), so the prediction is a single fused MXU
    # matmul against the whole (f_pad, 128) weight block.
    feats = []
    xpow = xp
    for d in range(1, x_deg + 1):
        feats.append(xpow)
        if d < x_deg:
            xpow = xpow * xp
    ypow = yp
    for d in range(1, y_deg + 1):
        feats.append(ypow)
        if d < y_deg:
            ypow = ypow * yp
    feats.append(jnp.ones((xp.shape[0], 1), dtype=xp.dtype))          # intercept column
    if f_pad > f + 1:
        feats.append(jnp.zeros((xp.shape[0], f_pad - f - 1), dtype=xp.dtype))
    X = jnp.concatenate(feats, axis=-1)                               # (TILE_B, f_pad)

    # Fused matmul (lane-dense N for the MXU), then store only the real out_dim columns:
    # the HBM output stays (B, out_dim), so writeback traffic is 16 B/row, not 512 B/row.
    result = jnp.dot(X, w_ref[0], preferred_element_type=jnp.float32)  # (TILE_B, n_pad)
    o_ref[...] = result[:, :out_dim].astype(o_ref.dtype)


def polynomial_regressor_forward(x, y, t, params, *, x_deg, y_deg,
                                 tile_b=1024, min_pallas_batch=64):
    """params: dict of stacked per-step parameters (leading axis = num_steps)."""
    B, x_dim = x.shape
    _, y_dim = y.shape
    num_steps, out_dim, F = params["coef"].shape
    assert F == x_dim * x_deg + y_dim * y_deg

    # Tiny-batch fast path: launch + pipeline overhead dwarfs the actual work.
    if B < min_pallas_batch:
        return _reference_forward(x.astype(jnp.float32), y.astype(jnp.float32),
                                  t, params, x_deg=x_deg, y_deg=y_deg)

    f32 = jnp.float32
    f_pad = _round_up(F + 1, 8)       # +1 for the constant-1 intercept column, 8-aligned K
    n_pad = _round_up(out_dim, 128)   # lane-dense matmul N (output itself stays out_dim wide)

    # Batch tiling over the ORIGINAL arrays (no wrapper pad / slice copies).
    # For large batches cap the tile so the grid has >= 2 tiles, letting
    # dimension_semantics=("parallel",) shard the batch across both v7x TensorCores.
    TILE_B = min(tile_b, _round_up(B, 8))
    if B > 256:
        TILE_B = min(TILE_B, _round_up(pl.cdiv(B, 2), 8))
    TILE_B = max(TILE_B, 8)
    num_tiles = pl.cdiv(B, TILE_B)

    # Stacked per-step stats: row 0 = means, row 1 = 1/std.
    x_stats = jnp.stack([params["x_means"].astype(f32),
                         1.0 / params["x_stds"].astype(f32)], axis=1)   # (S, 2, x_dim)
    y_stats = jnp.stack([params["y_means"].astype(f32),
                         1.0 / params["y_stds"].astype(f32)], axis=1)   # (S, 2, y_dim)

    # RidgeCV: predict = X @ coef.T + intercept.  Pre-transpose to (F, out_dim), pad to
    # (f_pad, n_pad), and fold the intercept into row F (matched by the basis' constant-1
    # column), so there is no separate bias stream or add.
    w_all = jnp.zeros((num_steps, f_pad, n_pad), f32)
    w_all = w_all.at[:, :F, :out_dim].set(
        jnp.transpose(params["coef"].astype(f32), (0, 2, 1)))
    w_all = w_all.at[:, F, :out_dim].set(params["intercept"].astype(f32))

    # k = t[0, 0]; the PyTorch module asserts all(t == k).
    # TODO(synk): the runtime `assert torch.all(t == k)` has no traced equivalent here.
    k_arr = t[:1, 0].astype(jnp.int32)                                   # (1,) scalar prefetch

    kernel = functools.partial(_poly_kernel, x_deg=x_deg, y_deg=y_deg,
                               f=F, f_pad=f_pad, out_dim=out_dim)

    grid_spec = pltpu.PrefetchScalarGridSpec(
        num_scalar_prefetch=1,
        grid=(num_tiles,),
        in_specs=[
            # batch-tiled inputs (pipelined / double-buffered over the grid; boundary
            # block is padded by Pallas when TILE_B does not divide B)
            pl.BlockSpec((TILE_B, x_dim), lambda i, k: (i, 0)),
            pl.BlockSpec((TILE_B, y_dim), lambda i, k: (i, 0)),
            # per-step parameters, selected by the scalar-prefetched k; constant block
            # index over the batch grid -> loaded once, stay VMEM-resident.
            pl.BlockSpec((1, 2, x_dim), lambda i, k: (k[0], 0, 0)),
            pl.BlockSpec((1, 2, y_dim), lambda i, k: (k[0], 0, 0)),
            pl.BlockSpec((1, f_pad, n_pad), lambda i, k: (k[0], 0, 0)),
        ],
        # true-width output: boundary writes are masked by the pipeline, no slice copy.
        out_specs=pl.BlockSpec((TILE_B, out_dim), lambda i, k: (i, 0)),
    )

    out = pl.pallas_call(
        kernel,
        out_shape=jax.ShapeDtypeStruct((B, out_dim), jnp.float32),
        grid_spec=grid_spec,
        compiler_params=pltpu.CompilerParams(
            dimension_semantics=("parallel",)),
    )(k_arr, x.astype(f32), y.astype(f32), x_stats, y_stats, w_all)

    return out


if __name__ == "__main__":
    # Small, forward-consistent shapes.
    x_dim, y_dim = 4, 4
    x_deg, y_deg = 3, 2
    out_dim = 4
    num_steps = 3
    F = x_dim * x_deg + y_dim * y_deg  # polynomial basis width = 20

    key = jax.random.PRNGKey(0)
    k_x, k_y, k_xm, k_xs, k_ym, k_ys, k_w, k_b = jax.random.split(key, 8)

    # Deterministic synthetic parameters (fit() products: per-step stats + RidgeCV coefs).
    params = {
        "x_means": jax.random.normal(k_xm, (num_steps, x_dim), dtype=jnp.float32),
        "x_stds": jnp.abs(jax.random.normal(k_xs, (num_steps, x_dim), dtype=jnp.float32)) + 0.5,
        "y_means": jax.random.normal(k_ym, (num_steps, y_dim), dtype=jnp.float32),
        "y_stds": jnp.abs(jax.random.normal(k_ys, (num_steps, y_dim), dtype=jnp.float32)) + 0.5,
        "coef": jax.random.normal(k_w, (num_steps, out_dim, F), dtype=jnp.float32) * 0.1,
        "intercept": jax.random.normal(k_b, (num_steps, out_dim), dtype=jnp.float32),
    }

    # Case 1: tiny batch forced through the Pallas path (single tile, no padding wrappers).
    B = 8
    x = jax.random.normal(k_x, (B, x_dim), dtype=jnp.float32)
    y = jax.random.normal(k_y, (B, y_dim), dtype=jnp.float32)
    t = jnp.full((B, 1), 1, dtype=jnp.int32)  # all rows at step k = 1

    out = polynomial_regressor_forward(x, y, t, params, x_deg=x_deg, y_deg=y_deg,
                                       min_pallas_batch=0)
    out = jax.block_until_ready(out)
    ref = _reference_forward(x, y, t, params, x_deg=x_deg, y_deg=y_deg)
    assert out.shape == (B, out_dim) and out.dtype == jnp.float32
    assert jnp.allclose(out, ref, atol=1e-3, rtol=1e-3)

    # Case 2: non-multiple batch, >= 2 grid tiles (exercises boundary padding / masked
    # boundary writes / megacore-parallel batch split).
    B2 = 300
    x2 = jax.random.normal(jax.random.PRNGKey(1), (B2, x_dim), dtype=jnp.float32)
    y2 = jax.random.normal(jax.random.PRNGKey(2), (B2, y_dim), dtype=jnp.float32)
    t2 = jnp.full((B2, 1), 2, dtype=jnp.int32)

    out2 = polynomial_regressor_forward(x2, y2, t2, params, x_deg=x_deg, y_deg=y_deg)
    out2 = jax.block_until_ready(out2)
    ref2 = _reference_forward(x2, y2, t2, params, x_deg=x_deg, y_deg=y_deg)
    assert out2.shape == (B2, out_dim) and out2.dtype == jnp.float32
    assert jnp.allclose(out2, ref2, atol=1e-3, rtol=1e-3)

    # Case 3: larger divisible batch (multi-tile pipeline, default tile_b).
    B3 = 2048
    x3 = jax.random.normal(jax.random.PRNGKey(3), (B3, x_dim), dtype=jnp.float32)
    y3 = jax.random.normal(jax.random.PRNGKey(4), (B3, y_dim), dtype=jnp.float32)
    t3 = jnp.full((B3, 1), 0, dtype=jnp.int32)

    out3 = polynomial_regressor_forward(x3, y3, t3, params, x_deg=x_deg, y_deg=y_deg)
    out3 = jax.block_until_ready(out3)
    ref3 = _reference_forward(x3, y3, t3, params, x_deg=x_deg, y_deg=y_deg)
    assert out3.shape == (B3, out_dim) and out3.dtype == jnp.float32
    assert jnp.allclose(out3, ref3, atol=1e-3, rtol=1e-3)

    # Case 4: tiny batch via the pure-JAX fast path (default threshold).
    out4 = polynomial_regressor_forward(x, y, t, params, x_deg=x_deg, y_deg=y_deg)
    out4 = jax.block_until_ready(out4)
    assert jnp.allclose(out4, ref, atol=1e-3, rtol=1e-3)

    print("KERNEL_OK")
</pallas_src>

<mosaic_0001>
module attributes {stable_mosaic.version = 11 : i64} {
  func.func @_poly_kernel(%arg0: i32, %arg1: memref<1xi32, #tpu.memory_space<smem>>, %arg2: memref<8x4xf32, #tpu.memory_space<vmem>>, %arg3: memref<8x4xf32, #tpu.memory_space<vmem>>, %arg4: memref<1x2x4xf32, #tpu.memory_space<vmem>>, %arg5: memref<1x2x4xf32, #tpu.memory_space<vmem>>, %arg6: memref<1x24x128xf32, #tpu.memory_space<vmem>>, %arg7: memref<8x4xf32, #tpu.memory_space<vmem>>) attributes {dimension_semantics = [#tpu.dimension_semantics<parallel>], iteration_bounds = array<i64: 1>, scalar_prefetch = 1 : i64, scratch_operands = 0 : i64, tpu.core_type = #tpu.core_type<tc>, window_params = [{transform_indices = @transform_0, window_bounds = array<i64: 8, 4>}, {transform_indices = @transform_1, window_bounds = array<i64: 8, 4>}, {transform_indices = @transform_2, window_bounds = array<i64: 1, 2, 4>}, {transform_indices = @transform_3, window_bounds = array<i64: 1, 2, 4>}, {transform_indices = @transform_4, window_bounds = array<i64: 1, 24, 128>}, {transform_indices = @transform_5, window_bounds = array<i64: 8, 4>}]} {
    %c0 = arith.constant 0 : index
    %c0_0 = arith.constant 0 : index
    %c0_1 = arith.constant 0 : index
    %0 = vector.load %arg4[%c0, %c0_0, %c0_1] : memref<1x2x4xf32, #tpu.memory_space<vmem>>, vector<1x2x4xf32>
    %c0_2 = arith.constant 0 : index
    %c0_3 = arith.constant 0 : index
    %c0_4 = arith.constant 0 : index
    %1 = vector.load %arg5[%c0_2, %c0_3, %c0_4] : memref<1x2x4xf32, #tpu.memory_space<vmem>>, vector<1x2x4xf32>
    %c0_5 = arith.constant 0 : index
    %c0_6 = arith.constant 0 : index
    %2 = vector.load %arg2[%c0_5, %c0_6] : memref<8x4xf32, #tpu.memory_space<vmem>>, vector<8x4xf32>
    %3 = vector.extract_strided_slice %0 {offsets = [0, 0, 0], sizes = [1, 1, 4], strides = [1, 1, 1]} : vector<1x2x4xf32> to vector<1x1x4xf32>
    %4 = vector.shape_cast %3 : vector<1x1x4xf32> to vector<1x4xf32>
    %5 = vector.broadcast %4 : vector<1x4xf32> to vector<8x4xf32>
    %6 = arith.subf %2, %5 : vector<8x4xf32>
    %7 = vector.extract_strided_slice %0 {offsets = [0, 1, 0], sizes = [1, 1, 4], strides = [1, 1, 1]} : vector<1x2x4xf32> to vector<1x1x4xf32>
    %8 = vector.shape_cast %7 : vector<1x1x4xf32> to vector<1x4xf32>
    %9 = vector.broadcast %8 : vector<1x4xf32> to vector<8x4xf32>
    %10 = arith.mulf %6, %9 : vector<8x4xf32>
    %c0_7 = arith.constant 0 : index
    %c0_8 = arith.constant 0 : index
    %11 = vector.load %arg3[%c0_7, %c0_8] : memref<8x4xf32, #tpu.memory_space<vmem>>, vector<8x4xf32>
    %12 = vector.extract_strided_slice %1 {offsets = [0, 0, 0], sizes = [1, 1, 4], strides = [1, 1, 1]} : vector<1x2x4xf32> to vector<1x1x4xf32>
    %13 = vector.shape_cast %12 : vector<1x1x4xf32> to vector<1x4xf32>
    %14 = vector.broadcast %13 : vector<1x4xf32> to vector<8x4xf32>
    %15 = arith.subf %11, %14 : vector<8x4xf32>
    %16 = vector.extract_strided_slice %1 {offsets = [0, 1, 0], sizes = [1, 1, 4], strides = [1, 1, 1]} : vector<1x2x4xf32> to vector<1x1x4xf32>
    %17 = vector.shape_cast %16 : vector<1x1x4xf32> to vector<1x4xf32>
    %18 = vector.broadcast %17 : vector<1x4xf32> to vector<8x4xf32>
    %19 = arith.mulf %15, %18 : vector<8x4xf32>
    %20 = arith.mulf %10, %10 : vector<8x4xf32>
    %21 = arith.mulf %20, %10 : vector<8x4xf32>
    %22 = arith.mulf %19, %19 : vector<8x4xf32>
    %cst = arith.constant 1.000000e+00 : f32
    %23 = vector.broadcast %cst : f32 to vector<8x1xf32>
    %cst_9 = arith.constant 0.000000e+00 : f32
    %24 = vector.broadcast %cst_9 : f32 to vector<8x3xf32>
    %25 = tpu.concatenate %10, %20, %21, %19, %22, %23, %24 in 1 : vector<8x4xf32>, vector<8x4xf32>, vector<8x4xf32>, vector<8x4xf32>, vector<8x4xf32>, vector<8x1xf32>, vector<8x3xf32> -> vector<8x24xf32>
    %c0_10 = arith.constant 0 : index
    %c0_11 = arith.constant 0 : index
    %c0_12 = arith.constant 0 : index
    %26 = vector.load %arg6[%c0_10, %c0_11, %c0_12] : memref<1x24x128xf32, #tpu.memory_space<vmem>>, vector<1x24x128xf32>
    %27 = vector.shape_cast %26 : vector<1x24x128xf32> to vector<24x128xf32>
    %cst_13 = arith.constant dense<0.000000e+00> : vector<8x128xf32>
    %28 = tpu.matmul %25, %27, %cst_13 {dimension_numbers = #tpu.dot_dimension_numbers<[1], [0], [0], [1], [0, 0, 1, 1], [], []>} : vector<8x24xf32>, vector<24x128xf32>, vector<8x128xf32> -> vector<8x128xf32>
    %29 = vector.extract_strided_slice %28 {offsets = [0, 0], sizes = [8, 4], strides = [1, 1]} : vector<8x128xf32> to vector<8x4xf32>
    %c0_14 = arith.constant 0 : index
    %c0_15 = arith.constant 0 : index
    %30 = vector.load %arg7[%c0_14, %c0_15] : memref<8x4xf32, #tpu.memory_space<vmem>>, vector<8x4xf32>
    tpu.vector_store %arg7[%c0_14, %c0_15], %29 {strides = array<i32>} : memref<8x4xf32, #tpu.memory_space<vmem>>, vector<8x4xf32>,
    return
  }
  func.func @transform_0(%arg0: i32, %arg1: memref<1xi32, #tpu.memory_space<smem>>) -> (i32, i32) {
    %c0_i32 = arith.constant 0 : i32
    %c0_i32_0 = arith.constant 0 : i32
    return %arg0, %c0_i32 : i32, i32
  }
  func.func @transform_1(%arg0: i32, %arg1: memref<1xi32, #tpu.memory_space<smem>>) -> (i32, i32) {
    %c0_i32 = arith.constant 0 : i32
    %c0_i32_0 = arith.constant 0 : i32
    return %arg0, %c0_i32 : i32, i32
  }
  func.func @transform_2(%arg0: i32, %arg1: memref<1xi32, #tpu.memory_space<smem>>) -> (i32, i32, i32) {
    %c0 = arith.constant 0 : index
    %0 = memref.load %arg1[%c0] : memref<1xi32, #tpu.memory_space<smem>>
    %c0_i32 = arith.constant 0 : i32
    %c0_i32_0 = arith.constant 0 : i32
    %c0_i32_1 = arith.constant 0 : i32
    return %0, %c0_i32, %c0_i32_0 : i32, i32, i32
  }
  func.func @transform_3(%arg0: i32, %arg1: memref<1xi32, #tpu.memory_space<smem>>) -> (i32, i32, i32) {
    %c0 = arith.constant 0 : index
    %0 = memref.load %arg1[%c0] : memref<1xi32, #tpu.memory_space<smem>>
    %c0_i32 = arith.constant 0 : i32
    %c0_i32_0 = arith.constant 0 : i32
    %c0_i32_1 = arith.constant 0 : i32
    return %0, %c0_i32, %c0_i32_0 : i32, i32, i32
  }
  func.func @transform_4(%arg0: i32, %arg1: memref<1xi32, #tpu.memory_space<smem>>) -> (i32, i32, i32) {
    %c0 = arith.constant 0 : index
    %0 = memref.load %arg1[%c0] : memref<1xi32, #tpu.memory_space<smem>>
    %c0_i32 = arith.constant 0 : i32
    %c0_i32_0 = arith.constant 0 : i32
    %c0_i32_1 = arith.constant 0 : i32
    return %0, %c0_i32, %c0_i32_0 : i32, i32, i32
  }
  func.func @transform_5(%arg0: i32, %arg1: memref<1xi32, #tpu.memory_space<smem>>) -> (i32, i32) {
    %c0_i32 = arith.constant 0 : i32
    %c0_i32_0 = arith.constant 0 : i32
    return %arg0, %c0_i32 : i32, i32
  }
}

</mosaic_0001>

<llo_original>
// kernel: tpu_custom_call.1
$region0: #{tpu_custom_call.1}
  #allocation0 [shape = 'u32[]', space=smem, size = 0x4, offset = 0x4, fixed_abs, tag = 'smem constant byte address 0x4 - core index']
  #allocation1 [shape = 'u32[144,128]{1,0:T(1,128)}', space=vmem, size = 0x12000, scoped, tag = 'internal scratch']
  #allocation2 [shape = 's32[1]{0}', space=sflag, size = 0x4, scoped, tag = 'scoped memory for tpu_custom_call.1']
  #allocation3 [shape = 's32[1]{0:T(128)S(6)}', space=smem, size = 0x200, scoped, tag = 'prefetched SMEM operand 0']
  %s0 = inlined_call_operand.<no memory space> [shape: s32[1], index: 0, kind: input, shape index: {}]
  %s1 = inlined_call_operand.vmem [shape: f32[8,4], index: 1, kind: input, shape index: {}]
  %s2 = inlined_call_operand.vmem [shape: f32[8,4], index: 2, kind: input, shape index: {}]
  %s3 = inlined_call_operand.vmem [shape: f32[3,2,4], index: 3, kind: input, shape index: {}]
  %s4 = inlined_call_operand.vmem [shape: f32[3,2,4], index: 4, kind: input, shape index: {}]
  %s5 = inlined_call_operand.hbm [shape: f32[3,24,128], index: 5, kind: input, shape index: {}]
  %s6 = inlined_call_operand.vmem [shape: f32[8,4], index: 6, kind: output, shape index: {}]
  %s7 = sld [smem:[#allocation0]]
  $region34: #{tpu_custom_call.1} parent=0
    _
  %s9 = ssub.s32 1, %s7
  %s10 = scalar_select 0, %s9, %s7
  %11 = sst [smem:[#allocation3]] %s0
  $region1: #{tpu_custom_call.1} parent=0
    #allocation4 [shape = 'u8[12288]{0}', space=vmem, size = 0x3000, scoped, tag = 'input window, operand 5, single buffered']
    #allocation5 [shape = 's32[1]{0}', space=sflag, size = 0x4, scoped, tag = 'scoped memory for tpu_custom_call.1']
    %12 = vsyncpa [#allocation5], 0
    // Predicated region
    $region2: #{tpu_custom_call.1} parent=1 // pred_check
      _
    $region3: #{tpu_custom_call.1} parent=1 // pred_check_branch
      %14 = sbr.rel (0) target = $region5
    $region4: #{tpu_custom_call.1} parent=1 // pred_region
      _
    $region5: #{tpu_custom_call.1} parent=1 // pred_fallthru
      _
    // Predicated region
    $region6: #{tpu_custom_call.1} parent=1 // pred_check
      _
    $region7: #{tpu_custom_call.1} parent=1 // pred_check_branch
      %16 = sbr.rel (0) target = $region9
    $region8: #{tpu_custom_call.1} parent=1 // pred_region
      _
    $region9: #{tpu_custom_call.1} parent=1 // pred_fallthru
      _
    // Predicated region
    $region10: #{tpu_custom_call.1} parent=1 // pred_check
      _
    $region11: #{tpu_custom_call.1} parent=1 // pred_check_branch
      %18 = sbr.rel (0) target = $region13
    $region12: #{tpu_custom_call.1} parent=1 // pred_region
      %s19 = sld [smem:[#allocation3]]
      %p20 = scmp.lt.s32.totalorder %s19, 2
      %s21 = scalar_select %p20, %s19, 2
      %s22 = smul.addr %s21, 2
      %s23 = scalar_lea.vmem %s3, %s22
      %s24 = sld [smem:[#allocation3]]
    $region13: #{tpu_custom_call.1} parent=1 // pred_fallthru
      _
    // Predicated region
    $region14: #{tpu_custom_call.1} parent=1 // pred_check
      _
    $region15: #{tpu_custom_call.1} parent=1 // pred_check_branch
      %26 = sbr.rel (0) target = $region17
    $region16: #{tpu_custom_call.1} parent=1 // pred_region
      %s27 = sld [smem:[#allocation3]]
      %p28 = scmp.lt.s32.totalorder %s27, 2
      %s29 = scalar_select %p28, %s27, 2
      %s30 = smul.addr %s29, 2
      %s31 = scalar_lea.vmem %s4, %s30
      %s32 = sld [smem:[#allocation3]]
    $region17: #{tpu_custom_call.1} parent=1 // pred_fallthru
      _
    // Predicated region
    $region18: #{tpu_custom_call.1} parent=1 // pred_check
      _
    $region19: #{tpu_custom_call.1} parent=1 // pred_check_branch
      %34 = sbr.rel (0) target = $region21
    $region20: #{tpu_custom_call.1} parent=1 // pred_region
      %s35 = sld [smem:[#allocation3]]
      %s37 = ssub.s32 384, 384
      %38 = vsyncadd [#allocation5], %s37
      %s39 = smul.addr %s35, 3
      %s40 = smul.addr %s39, 128
      %s41 = scalar_lea.hbm %s5, %s40
      %s42 = sshll.u32 [#allocation4], 4
      %s43 = int_to_ptr.vmem [resolvable:$true] %s42
      %48 = dma.hbm_to_vmem [thread:$0]  %s41, 384, %s43, [#allocation5], 128, 128, 8
    $region21: #{tpu_custom_call.1} parent=1 // pred_fallthru
      _
    // Predicated region
    $region22: #{tpu_custom_call.1} parent=1 // pred_check
      _
    $region23: #{tpu_custom_call.1} parent=1 // pred_check_branch
      %50 = sbr.rel (0) target = $region25
    $region24: #{tpu_custom_call.1} parent=1 // pred_region
      %51 = dma.done [#allocation5], 384
    $region25: #{tpu_custom_call.1} parent=1 // pred_fallthru
      _
    %s52 = sld [smem:[#allocation3]]
    %p53 = scmp.lt.s32.totalorder %s52, 2
    %s54 = scalar_select %p53, %s52, 2
    %s55 = smul.addr %s54, 2
    %s56 = scalar_lea.vmem %s3, %s55
    %s57 = sld [smem:[#allocation3]]
    %p58 = scmp.lt.s32.totalorder %s57, 2
    %s59 = scalar_select %p58, %s57, 2
    %s60 = smul.addr %s59, 2
    %s61 = scalar_lea.vmem %s4, %s60
    %s62 = sld [smem:[#allocation3]]
    %p63 = scmp.lt.s32.totalorder %s62, 2
    %s64 = scalar_select %p63, %s62, 2
    %s65 = smul.addr %s64, 2
    %s66 = scalar_lea.vmem %s3, %s65
    %s67 = sld [smem:[#allocation3]]
    %s68 = sld [smem:[#allocation3]]
    %p69 = scmp.lt.s32.totalorder %s68, 2
    %s70 = scalar_select %p69, %s68, 2
    %s71 = smul.addr %s70, 2
    %s72 = scalar_lea.vmem %s4, %s71
    %s73 = sld [smem:[#allocation3]]
    %s74 = sld [smem:[#allocation3]]
    %v75 = vld [vmem:[%s66] sm:$0x3]
    %v76 = vld [vmem:[%s72] sm:$0x3]
    %v77 = vld [vmem:[%s1] sm:$0xff]
    %v78 = vlaneseq
    %v79 = vshrl.u32 %v78, 7
    %v80 = vsub.s32 0, %v79
    %v81 = vrot.slane %v75, %v80
    %v82 = vsub.f32 %v77, %v81
    %v83 = vlaneseq
    %v84 = vshrl.u32 %v83, 7
    %v85 = vsub.s32 1, %v84
    %v86 = vrot.slane %v75, %v85
    %v87 = vmul.f32 %v82, %v86
    %v88 = vld [vmem:[%s2] sm:$0xff]
    %v89 = vlaneseq
    %v90 = vshrl.u32 %v89, 7
    %v91 = vsub.s32 0, %v90
    %v92 = vrot.slane %v76, %v91
    %v93 = vsub.f32 %v88, %v92
    %v94 = vlaneseq
    %v95 = vshrl.u32 %v94, 7
    %v96 = vsub.s32 1, %v95
    %v97 = vrot.slane %v76, %v96
    %v98 = vmul.f32 %v93, %v97
    %v99 = vmul.f32 %v87, %v87
    %v100 = vmul.f32 %v99, %v87
    %v101 = vmul.f32 %v98, %v98
    %103 = vrot.lane.b32.xlu0 %v99, 4
    %v104 = vpop.permute.xlu0 %103
    %107 = vrot.lane.b32.xlu0 %v100, 8
    %v108 = vpop.permute.xlu0 %107
    %111 = vrot.lane.b32.xlu0 %v98, 12
    %v112 = vpop.permute.xlu0 %111
    %115 = vrot.lane.b32.xlu0 %v101, 16
    %v116 = vpop.permute.xlu0 %115
    %vm118 = vcmask 31744
    %v119 = vsel %vm118, %v87, %v104
    %vm120 = vcmask 64512
    %v121 = vsel %vm120, %v119, %v108
    %vm122 = vcmask 97280
    %v123 = vsel %vm122, %v121, %v112
    %vm124 = vcmask 130048
    %v125 = vsel %vm124, %v123, %v116
    %vm126 = vcmask 162816
    %v127 = vsel %vm126, %v125, 1.0
    %vm128 = vcmask 171008
    %v129 = vsel %vm128, %v127, 0.0
    %v130 = vld [vmem:[#allocation4] sm:$0xff]
    %v131 = vld [vmem:[#allocation4 + $0x8] sm:$0xff]
    %v132 = vld [vmem:[#allocation4 + $0x10] sm:$0xff]
    %vm133 = vcmask 195584
    %v135 = vsel %vm133, %v129, 0
    %137 = vmatprep.subr.mxu0 0.0
    %138 = vmatpush1.msra.mxu0 0.0
    %139 = vmatprep.subr.mxu0 0.0
    %140 = vmatpush1.msra.mxu0 0.0
    %141 = vmatprep.subr.mxu0 0.0
    %142 = vmatpush1.msra.mxu0 0.0
    %143 = vmatprep.subr.mxu0 0.0
    %144 = vmatpush1.msra.mxu0 0.0
    %145 = vmatprep.subr.mxu0 0.0
    %146 = vmatpush1.msra.mxu0 0.0
    %147 = vmatprep.subr.mxu0 0.0
    %148 = vmatpush1.msra.mxu0 0.0
    %149 = vmatprep.subr.mxu0 0.0
    %150 = vmatpush1.msra.mxu0 0.0
    %151 = vmatprep.subr.mxu0 0.0
    %152 = vmatpush1.msra.mxu0 0.0
    %153 = vmatprep.subr.mxu0 0.0
    %154 = vmatpush1.msra.mxu0 0.0
    %155 = vmatprep.subr.mxu0 0.0
    %156 = vmatpush1.msra.mxu0 0.0
    %157 = vmatprep.subr.mxu0 0.0
    %158 = vmatpush1.msra.mxu0 0.0
    %159 = vmatprep.subr.mxu0 0.0
    %160 = vmatpush1.msra.mxu0 0.0
    %161 = vmatprep.subr.mxu0 0.0
    %162 = vmatpush1.msra.mxu0 0.0
    %163 = vmatprep.subr.mxu0 0.0
    %164 = vmatpush1.msra.mxu0 %v132
    %165 = vmatprep.subr.mxu0 0.0
    %166 = vmatpush1.msra.mxu0 %v131
    %167 = vmatprep.subr.mxu0 0.0
    %168 = vmatpush1.msra.mxu0 %v130
    %169 = vmatprep.subr.mxu0 0.0
    %170 = vmatpush2.msra.mxu0 0.0
    %171 = vmatprep.subr.mxu0 0.0
    %172 = vmatpush2.msra.mxu0 0.0
    %173 = vmatprep.subr.mxu0 0.0
    %174 = vmatpush2.msra.mxu0 0.0
    %175 = vmatprep.subr.mxu0 0.0
    %176 = vmatpush2.msra.mxu0 0.0
    %177 = vmatprep.subr.mxu0 0.0
    %178 = vmatpush2.msra.mxu0 0.0
    %179 = vmatprep.subr.mxu0 0.0
    %180 = vmatpush2.msra.mxu0 0.0
    %181 = vmatprep.subr.mxu0 0.0
    %182 = vmatpush2.msra.mxu0 0.0
    %183 = vmatprep.subr.mxu0 0.0
    %184 = vmatpush2.msra.mxu0 0.0
    %185 = vmatprep.subr.mxu0 0.0
    %186 = vmatpush2.msra.mxu0 0.0
    %187 = vmatprep.subr.mxu0 0.0
    %188 = vmatpush2.msra.mxu0 0.0
    %189 = vmatprep.subr.mxu0 0.0
    %190 = vmatpush2.msra.mxu0 0.0
    %191 = vmatprep.subr.mxu0 0.0
    %192 = vmatpush2.msra.mxu0 0.0
    %193 = vmatprep.subr.mxu0 0.0
    %194 = vmatpush2.msra.mxu0 0.0
    %195 = vmatprep.subr.mxu0 0.0
    %196 = vmatpush2.msra.mxu0 0.0
    %197 = vmatprep.subr.mxu0 0.0
    %198 = vmatpush2.msra.mxu0 0.0
    %199 = vmatprep.subr.mxu0 0.0
    %200 = vmatpush2.msra.mxu0 0.0
    %201 = vmatprep.mubr.f32.mxu0 0.0
    %202 = vmatmul.mubr.f32.gmra.mxu0 %v135
    %v203 = vpop.f32.mrf.mxu0
    %v204 = vadd.f32 0.0, %v203
    %v205 = vpop.f32.mrf.mxu0
    %206 = vdwg.mxu0
    %207 = vst.msk [vmem:[%s6] sm:$0xff] %vm118, %v204
    // Predicated region
    $region26: #{tpu_custom_call.1} parent=1 // pred_check
      _
    $region27: #{tpu_custom_call.1} parent=1 // pred_check_branch
      %209 = sbr.rel (0) target = $region29
    $region28: #{tpu_custom_call.1} parent=1 // pred_region
      _
    $region29: #{tpu_custom_call.1} parent=1 // pred_fallthru
      _
    // Predicated region
    $region30: #{tpu_custom_call.1} parent=1 // pred_check
      _
    $region31: #{tpu_custom_call.1} parent=1 // pred_check_branch
      %211 = sbr.rel (0) target = $region33
    $region32: #{tpu_custom_call.1} parent=1 // pred_region
      _
    $region33: #{tpu_custom_call.1} parent=1 // pred_fallthru
      _
    %212 = vsyncpa [#allocation5], 1

</llo_original>
